<compile_context>
chip_gen: v7x
topology: tpu7x:2x2x1
jax: 0.10.0
libtpu: 0.0.40
codegen_flags: <defaults>
</compile_context>

<pallas_src>
import functools

import jax
import jax.numpy as jnp
from jax.experimental import pallas as pl
from jax.experimental.pallas import tpu as pltpu

EPS = 1e-5                        # PyTorch BatchNorm2d default eps
K = 3                             # kernel_size of the "same" path
_VMEM_LIMIT = 32 * 1024 * 1024    # explicit scoped-VMEM limit (safe on v5e/v6e/v7x)
_VMEM_BUDGET = 12 * 1024 * 1024   # per-grid-step working-set target used to size tiles


def _conv_stats_kernel(w_img, x_ref, w_ref, conv_ref, sum_ref, sumsq_ref):
    """3x3 reflection-padded conv on one (batch, row-tile) block + partial BN stats.

    w_img    : static image width W
    x_ref    : (1, 1, Cin, (TH+2)*W + 2) flat, H-reflection-padded rows (+1 guard each end)
    w_ref    : (Cout, 9*Cin)             tap-major conv weight
    conv_ref : (1, Cout, TH*W)           lane-dense conv output tile
    sum_ref  : (1, 1, Cout, 1)           per-tile sum over pixels
    sumsq_ref: (1, 1, Cout, 1)           per-tile sum of squares over pixels
    """
    thw = conv_ref.shape[2]
    th = thw // w_img
    xh = x_ref[0, 0]                                        # (Cin, (TH+2)*W + 2)

    # Column-id pattern (0..W-1 repeated per output row) for the W-edge reflection fix-up.
    col_id = jnp.tile(jax.lax.broadcasted_iota(jnp.int32, (1, w_img), 1), (1, th))
    first_col = col_id == 0
    last_col = col_id == (w_img - 1)

    # For output flat index j = r*W + c, tap (kh, kw) needs flat element j + kh*W + (kw-1)
    # (the +1 guard offset is baked into the block), so each tap is a static lane slice.
    # Column reflection (c-1 at c==0 -> c+1, c+1 at c==W-1 -> c-1) is a masked select.
    parts = []
    for kh in range(K):
        base = kh * w_img
        t_m1 = xh[:, base:base + thw]                       # column c-1 (wraps at rows)
        t_0 = xh[:, base + 1:base + 1 + thw]                # column c
        t_p1 = xh[:, base + 2:base + 2 + thw]               # column c+1 (wraps at rows)
        parts.append(jnp.where(first_col, t_p1, t_m1))      # kw=0, left-edge reflection
        parts.append(t_0)                                   # kw=1
        parts.append(jnp.where(last_col, t_m1, t_p1))       # kw=2, right-edge reflection
    col_slab = jnp.concatenate(parts, axis=0)               # (9*Cin, TH*W), lane-dense

    acc = jnp.dot(w_ref[...], col_slab,
                  preferred_element_type=jnp.float32)       # (Cout, TH*W)
    conv_ref[...] = acc.reshape(conv_ref.shape)

    # Single-pass partial statistics; mean/var are finalized exactly in the wrapper.
    cout = conv_ref.shape[1]
    sum_ref[...] = jnp.sum(acc, axis=1, keepdims=True).reshape(1, 1, cout, 1)
    sumsq_ref[...] = jnp.sum(acc * acc, axis=1, keepdims=True).reshape(1, 1, cout, 1)


def _bn_prelu_kernel(conv_ref, scale_ref, shift_ref, a_ref, out_ref):
    """Folded BatchNorm affine + PReLU on one lane-dense (1, Cout, TH*W) block.

    scale_ref: (Cout, 1)  gamma * rsqrt(var + eps)
    shift_ref: (Cout, 1)  beta - mean * scale
    a_ref    : (1, 1) in SMEM, shared PReLU slope
    """
    cout = out_ref.shape[1]
    scale = scale_ref[...].reshape(1, cout, 1)
    shift = shift_ref[...].reshape(1, cout, 1)
    y = conv_ref[...] * scale + shift
    a = a_ref[0, 0]
    out_ref[...] = jnp.where(y > 0, y, a * y)


def _pick_row_tile(batch, h, w, cin, cout):
    """Largest row tile TH that divides H, keeps the flat output block lane-aligned
    (TH*W % 128 == 0 unless TH == H), and fits the per-step VMEM working set."""
    def fits(th):
        lwin = (th + 2) * w + 2
        in_blk = cin * lwin * 4
        out_blk = cout * th * w * 4
        work = (9 * cin + 2 * cout) * th * w * 4   # col slab value + f32 accumulator
        return 2 * in_blk + 2 * out_blk + work <= _VMEM_BUDGET

    divisors = [d for d in range(1, h + 1) if h % d == 0]
    legal = [d for d in divisors if d == h or (d * w) % 128 == 0]
    fitting = [d for d in legal if fits(d)] or [min(legal)]
    th = max(fitting)
    if batch == 1 and th == h:
        # Keep at least 2 blocks on a parallel grid axis so both v7x TensorCores get work.
        smaller = [d for d in fitting if d < h]
        if smaller:
            th = max(smaller)
    return th


def same_conv(x_nchw, w_oihw, gamma, beta, prelu_a):
    """NCHW in / NCHW out, matching the PyTorch SameConv forward (training-mode BN)."""
    B, Cin, H, W = x_nchw.shape
    Cout, Cin_w, ksize, _ = w_oihw.shape
    assert ksize == K and Cin_w == Cin, "only the kernel_size=3 'same' path is implemented"
    assert H >= 2 and W >= 2, "ReflectionPad2d(1) requires H >= 2 and W >= 2"
    # TODO(synk): kernel_size != 3 (padding=0) branch of the PyTorch module is not implemented.

    TH = _pick_row_tile(B, H, W, Cin, Cout)
    nH = H // TH
    THW = TH * W
    Lwin = (TH + 2) * W + 2

    x = x_nchw.astype(jnp.float32)

    # H-direction reflection pad + spatial flatten (+1 guard element per end) in a single
    # concatenate; channels-major throughout, so no NHWC transpose is ever materialized.
    zpad = jnp.zeros((B, Cin, 1), jnp.float32)
    xflat = jnp.concatenate(
        [zpad,
         x[:, :, 1, :],                     # reflection of padded row -1
         x.reshape(B, Cin, H * W),
         x[:, :, H - 2, :],                 # reflection of padded row H
         zpad],
        axis=-1)                            # (B, Cin, (H+2)*W + 2)

    if nH == 1:
        xwin = xflat.reshape(B, 1, Cin, Lwin)      # free view: no halo duplication
    else:
        # Overlapping (TH+2)-row windows, only hit when a full-height tile does not fit.
        # TODO(synk): replace with in-kernel manual-DMA halo fetches to avoid this copy.
        idx = jnp.arange(nH)[:, None] * THW + jnp.arange(Lwin)[None, :]
        xwin = jnp.moveaxis(xflat[:, :, idx], 2, 1)   # (B, nH, Cin, Lwin)

    # Flipped, tap-major conv weight: (Cout, kh*kw*Cin).
    w_mat = jnp.transpose(w_oihw, (0, 2, 3, 1)).reshape(Cout, K * K * Cin).astype(jnp.float32)

    # ---- phase 1: lane-dense conv + per-tile BN partial sums ----
    conv_flat, psum, psumsq = pl.pallas_call(
        functools.partial(_conv_stats_kernel, W),
        out_shape=(
            jax.ShapeDtypeStruct((B, Cout, H * W), jnp.float32),
            jax.ShapeDtypeStruct((B, nH, Cout, 1), jnp.float32),
            jax.ShapeDtypeStruct((B, nH, Cout, 1), jnp.float32),
        ),
        grid=(B, nH),
        in_specs=[
            pl.BlockSpec((1, 1, Cin, Lwin), lambda b, h: (b, h, 0, 0)),
            pl.BlockSpec((Cout, K * K * Cin), lambda b, h: (0, 0)),
        ],
        out_specs=(
            pl.BlockSpec((1, Cout, THW), lambda b, h: (b, 0, h)),
            pl.BlockSpec((1, 1, Cout, 1), lambda b, h: (b, h, 0, 0)),
            pl.BlockSpec((1, 1, Cout, 1), lambda b, h: (b, h, 0, 0)),
        ),
        compiler_params=pltpu.CompilerParams(
            dimension_semantics=("parallel", "parallel"),
            vmem_limit_bytes=_VMEM_LIMIT),
    )(xwin, w_mat)

    # ---- tiny glue: exact global BN statistics from the per-tile partials ----
    n = B * H * W
    s1 = jnp.sum(psum, axis=(0, 1))[:, 0]           # (Cout,)
    s2 = jnp.sum(psumsq, axis=(0, 1))[:, 0]
    mean = s1 / n
    var = jnp.maximum(s2 / n - mean * mean, 0.0)    # biased variance (training-mode BN)
    scale = gamma.astype(jnp.float32) * jax.lax.rsqrt(var + EPS)
    shift = beta.astype(jnp.float32) - mean * scale
    scale2 = scale.reshape(Cout, 1)
    shift2 = shift.reshape(Cout, 1)
    a2 = jnp.asarray(prelu_a, jnp.float32).reshape(1, 1)

    # ---- phase 2: folded-BN affine + PReLU, lane-dense, output aliased onto conv_flat ----
    out_flat = pl.pallas_call(
        _bn_prelu_kernel,
        out_shape=jax.ShapeDtypeStruct((B, Cout, H * W), jnp.float32),
        grid=(B, nH),
        in_specs=[
            pl.BlockSpec((1, Cout, THW), lambda b, h: (b, 0, h)),
            pl.BlockSpec((Cout, 1), lambda b, h: (0, 0)),
            pl.BlockSpec((Cout, 1), lambda b, h: (0, 0)),
            pl.BlockSpec(memory_space=pltpu.MemorySpace.SMEM),
        ],
        out_specs=pl.BlockSpec((1, Cout, THW), lambda b, h: (b, 0, h)),
        input_output_aliases={0: 0},
        compiler_params=pltpu.CompilerParams(
            dimension_semantics=("parallel", "parallel"),
            vmem_limit_bytes=_VMEM_LIMIT),
    )(conv_flat, scale2, shift2, a2)

    return out_flat.reshape(B, Cout, H, W)


def _reference(x_nchw, w_oihw, gamma, beta, prelu_a):
    """Pure-JAX reference for verification."""
    x = jnp.transpose(x_nchw, (0, 2, 3, 1))
    xpad = jnp.pad(x, ((0, 0), (1, 1), (1, 1), (0, 0)), mode="reflect")
    w = jnp.transpose(w_oihw, (2, 3, 1, 0))
    conv = jax.lax.conv_general_dilated(
        xpad, w, window_strides=(1, 1), padding="VALID",
        dimension_numbers=("NHWC", "HWIO", "NHWC"))
    mean = conv.mean(axis=(0, 1, 2), keepdims=True)
    var = ((conv - mean) ** 2).mean(axis=(0, 1, 2), keepdims=True)
    y = (conv - mean) / jnp.sqrt(var + EPS) * gamma + beta
    y = jnp.where(y > 0, y, prelu_a * y)
    return jnp.transpose(y, (0, 3, 1, 2))


if __name__ == "__main__":
    key = jax.random.PRNGKey(0)
    k1, k2, k3, k4 = jax.random.split(key, 4)

    B, Cin, Cout, Hs, Ws = 2, 4, 8, 16, 16
    x = jax.random.normal(k1, (B, Cin, Hs, Ws), jnp.float32)
    w = jax.random.normal(k2, (Cout, Cin, 3, 3), jnp.float32) * 0.1   # Conv2d weight (OIHW)
    gamma = 1.0 + 0.1 * jax.random.normal(k3, (Cout,), jnp.float32)   # BN weight
    beta = 0.1 * jax.random.normal(k4, (Cout,), jnp.float32)          # BN bias
    prelu_a = jnp.float32(0.25)                                       # PReLU default init

    fn = jax.jit(same_conv)
    out = jax.block_until_ready(fn(x, w, gamma, beta, prelu_a))

    ref = _reference(x, w, gamma, beta, prelu_a)
    assert out.shape == (B, Cout, Hs, Ws)
    err = float(jnp.max(jnp.abs(out - ref)))
    assert jnp.allclose(out, ref, atol=1e-3, rtol=1e-3), err

    print("KERNEL_OK")
</pallas_src>

<mosaic_0001>
module attributes {stable_mosaic.version = 11 : i64} {
  func.func @_conv_stats_kernel(%arg0: i32, %arg1: i32, %arg2: memref<1x1x4x290xf32, #tpu.memory_space<vmem>>, %arg3: memref<8x36xf32, #tpu.memory_space<vmem>>, %arg4: memref<1x8x256xf32, #tpu.memory_space<vmem>>, %arg5: memref<1x1x8x1xf32, #tpu.memory_space<vmem>>, %arg6: memref<1x1x8x1xf32, #tpu.memory_space<vmem>>) attributes {dimension_semantics = [#tpu.dimension_semantics<parallel>, #tpu.dimension_semantics<parallel>], iteration_bounds = array<i64: 2, 1>, scalar_prefetch = 0 : i64, scratch_operands = 0 : i64, tpu.core_type = #tpu.core_type<tc>, window_params = [{transform_indices = @transform_0, window_bounds = array<i64: 1, 1, 4, 290>}, {pipeline_mode = #tpu.pipeline_mode<synchronous>, transform_indices = @transform_1, window_bounds = array<i64: 8, 36>}, {transform_indices = @transform_2, window_bounds = array<i64: 1, 8, 256>}, {transform_indices = @transform_3, window_bounds = array<i64: 1, 1, 8, 1>}, {transform_indices = @transform_4, window_bounds = array<i64: 1, 1, 8, 1>}]} {
    %c0 = arith.constant 0 : index
    %c0_0 = arith.constant 0 : index
    %c0_1 = arith.constant 0 : index
    %c0_2 = arith.constant 0 : index
    %0 = vector.load %arg2[%c0, %c0_0, %c0_1, %c0_2] : memref<1x1x4x290xf32, #tpu.memory_space<vmem>>, vector<1x1x4x290xf32>
    %1 = vector.shape_cast %0 : vector<1x1x4x290xf32> to vector<4x290xf32>
    %2 = tpu.iota {dimensions = array<i32: 1>} : vector<1x16xi32>
    %3 = tpu.concatenate %2, %2, %2, %2, %2, %2, %2, %2, %2, %2, %2, %2, %2, %2, %2, %2 in 1 : vector<1x16xi32>, vector<1x16xi32>, vector<1x16xi32>, vector<1x16xi32>, vector<1x16xi32>, vector<1x16xi32>, vector<1x16xi32>, vector<1x16xi32>, vector<1x16xi32>, vector<1x16xi32>, vector<1x16xi32>, vector<1x16xi32>, vector<1x16xi32>, vector<1x16xi32>, vector<1x16xi32>, vector<1x16xi32> -> vector<1x256xi32>
    %c0_i32 = arith.constant 0 : i32
    %4 = vector.broadcast %c0_i32 : i32 to vector<1x256xi32>
    %5 = arith.cmpi eq, %3, %4 : vector<1x256xi32>
    %c15_i32 = arith.constant 15 : i32
    %6 = vector.broadcast %c15_i32 : i32 to vector<1x256xi32>
    %7 = arith.cmpi eq, %3, %6 : vector<1x256xi32>
    %8 = vector.extract_strided_slice %1 {offsets = [0, 0], sizes = [4, 256], strides = [1, 1]} : vector<4x290xf32> to vector<4x256xf32>
    %9 = vector.extract_strided_slice %1 {offsets = [0, 1], sizes = [4, 256], strides = [1, 1]} : vector<4x290xf32> to vector<4x256xf32>
    %10 = vector.extract_strided_slice %1 {offsets = [0, 2], sizes = [4, 256], strides = [1, 1]} : vector<4x290xf32> to vector<4x256xf32>
    %11 = vector.shape_cast %5 : vector<1x256xi1> to vector<1x256xi1>
    %12 = vector.broadcast %11 : vector<1x256xi1> to vector<4x256xi1>
    %13 = arith.select %12, %10, %8 : vector<4x256xi1>, vector<4x256xf32>
    %14 = vector.shape_cast %7 : vector<1x256xi1> to vector<1x256xi1>
    %15 = vector.broadcast %14 : vector<1x256xi1> to vector<4x256xi1>
    %16 = arith.select %15, %8, %10 : vector<4x256xi1>, vector<4x256xf32>
    %17 = vector.extract_strided_slice %1 {offsets = [0, 16], sizes = [4, 256], strides = [1, 1]} : vector<4x290xf32> to vector<4x256xf32>
    %18 = vector.extract_strided_slice %1 {offsets = [0, 17], sizes = [4, 256], strides = [1, 1]} : vector<4x290xf32> to vector<4x256xf32>
    %19 = vector.extract_strided_slice %1 {offsets = [0, 18], sizes = [4, 256], strides = [1, 1]} : vector<4x290xf32> to vector<4x256xf32>
    %20 = vector.shape_cast %5 : vector<1x256xi1> to vector<1x256xi1>
    %21 = vector.broadcast %20 : vector<1x256xi1> to vector<4x256xi1>
    %22 = arith.select %21, %19, %17 : vector<4x256xi1>, vector<4x256xf32>
    %23 = vector.shape_cast %7 : vector<1x256xi1> to vector<1x256xi1>
    %24 = vector.broadcast %23 : vector<1x256xi1> to vector<4x256xi1>
    %25 = arith.select %24, %17, %19 : vector<4x256xi1>, vector<4x256xf32>
    %26 = vector.extract_strided_slice %1 {offsets = [0, 32], sizes = [4, 256], strides = [1, 1]} : vector<4x290xf32> to vector<4x256xf32>
    %27 = vector.extract_strided_slice %1 {offsets = [0, 33], sizes = [4, 256], strides = [1, 1]} : vector<4x290xf32> to vector<4x256xf32>
    %28 = vector.extract_strided_slice %1 {offsets = [0, 34], sizes = [4, 256], strides = [1, 1]} : vector<4x290xf32> to vector<4x256xf32>
    %29 = vector.shape_cast %5 : vector<1x256xi1> to vector<1x256xi1>
    %30 = vector.broadcast %29 : vector<1x256xi1> to vector<4x256xi1>
    %31 = arith.select %30, %28, %26 : vector<4x256xi1>, vector<4x256xf32>
    %32 = vector.shape_cast %7 : vector<1x256xi1> to vector<1x256xi1>
    %33 = vector.broadcast %32 : vector<1x256xi1> to vector<4x256xi1>
    %34 = arith.select %33, %26, %28 : vector<4x256xi1>, vector<4x256xf32>
    %35 = tpu.concatenate %13, %9, %16, %22, %18, %25, %31, %27, %34 in 0 : vector<4x256xf32>, vector<4x256xf32>, vector<4x256xf32>, vector<4x256xf32>, vector<4x256xf32>, vector<4x256xf32>, vector<4x256xf32>, vector<4x256xf32>, vector<4x256xf32> -> vector<36x256xf32>
    %c0_3 = arith.constant 0 : index
    %c0_4 = arith.constant 0 : index
    %36 = vector.load %arg3[%c0_3, %c0_4] : memref<8x36xf32, #tpu.memory_space<vmem>>, vector<8x36xf32>
    %cst = arith.constant dense<0.000000e+00> : vector<8x256xf32>
    %37 = tpu.matmul %36, %35, %cst {dimension_numbers = #tpu.dot_dimension_numbers<[1], [0], [0], [1], [0, 0, 1, 1], [], []>} : vector<8x36xf32>, vector<36x256xf32>, vector<8x256xf32> -> vector<8x256xf32>
    %38 = vector.shape_cast %37 : vector<8x256xf32> to vector<1x8x256xf32>
    %c0_5 = arith.constant 0 : index
    %c0_6 = arith.constant 0 : index
    %c0_7 = arith.constant 0 : index
    %39 = vector.load %arg4[%c0_5, %c0_6, %c0_7] : memref<1x8x256xf32, #tpu.memory_space<vmem>>, vector<1x8x256xf32>
    tpu.vector_store %arg4[%c0_5, %c0_6, %c0_7], %38 {strides = array<i32>} : memref<1x8x256xf32, #tpu.memory_space<vmem>>, vector<1x8x256xf32>,
    %cst_8 = arith.constant dense<0.000000e+00> : vector<8xf32>
    %40 = vector.multi_reduction <add>, %37, %cst_8 [1] : vector<8x256xf32> to vector<8xf32>
    %41 = vector.shape_cast %40 : vector<8xf32> to vector<8x1xf32>
    %42 = vector.shape_cast %41 : vector<8x1xf32> to vector<1x1x8x1xf32>
    %c0_9 = arith.constant 0 : index
    %c0_10 = arith.constant 0 : index
    %c0_11 = arith.constant 0 : index
    %c0_12 = arith.constant 0 : index
    %43 = vector.load %arg5[%c0_9, %c0_10, %c0_11, %c0_12] : memref<1x1x8x1xf32, #tpu.memory_space<vmem>>, vector<1x1x8x1xf32>
    tpu.vector_store %arg5[%c0_9, %c0_10, %c0_11, %c0_12], %42 {strides = array<i32>} : memref<1x1x8x1xf32, #tpu.memory_space<vmem>>, vector<1x1x8x1xf32>,
    %44 = arith.mulf %37, %37 : vector<8x256xf32>
    %cst_13 = arith.constant dense<0.000000e+00> : vector<8xf32>
    %45 = vector.multi_reduction <add>, %44, %cst_13 [1] : vector<8x256xf32> to vector<8xf32>
    %46 = vector.shape_cast %45 : vector<8xf32> to vector<8x1xf32>
    %47 = vector.shape_cast %46 : vector<8x1xf32> to vector<1x1x8x1xf32>
    %c0_14 = arith.constant 0 : index
    %c0_15 = arith.constant 0 : index
    %c0_16 = arith.constant 0 : index
    %c0_17 = arith.constant 0 : index
    %48 = vector.load %arg6[%c0_14, %c0_15, %c0_16, %c0_17] : memref<1x1x8x1xf32, #tpu.memory_space<vmem>>, vector<1x1x8x1xf32>
    tpu.vector_store %arg6[%c0_14, %c0_15, %c0_16, %c0_17], %47 {strides = array<i32>} : memref<1x1x8x1xf32, #tpu.memory_space<vmem>>, vector<1x1x8x1xf32>,
    return
  }
  func.func @transform_0(%arg0: i32, %arg1: i32) -> (i32, i32, i32, i32) {
    %c0_i32 = arith.constant 0 : i32
    %c0_i32_0 = arith.constant 0 : i32
    %c0_i32_1 = arith.constant 0 : i32
    return %arg0, %arg1, %c0_i32, %c0_i32_0 : i32, i32, i32, i32
  }
  func.func @transform_1(%arg0: i32, %arg1: i32) -> (i32, i32) {
    %c0_i32 = arith.constant 0 : i32
    %c0_i32_0 = arith.constant 0 : i32
    %c0_i32_1 = arith.constant 0 : i32
    return %c0_i32, %c0_i32_0 : i32, i32
  }
  func.func @transform_2(%arg0: i32, %arg1: i32) -> (i32, i32, i32) {
    %c0_i32 = arith.constant 0 : i32
    %c0_i32_0 = arith.constant 0 : i32
    return %arg0, %c0_i32, %arg1 : i32, i32, i32
  }
  func.func @transform_3(%arg0: i32, %arg1: i32) -> (i32, i32, i32, i32) {
    %c0_i32 = arith.constant 0 : i32
    %c0_i32_0 = arith.constant 0 : i32
    %c0_i32_1 = arith.constant 0 : i32
    return %arg0, %arg1, %c0_i32, %c0_i32_0 : i32, i32, i32, i32
  }
  func.func @transform_4(%arg0: i32, %arg1: i32) -> (i32, i32, i32, i32) {
    %c0_i32 = arith.constant 0 : i32
    %c0_i32_0 = arith.constant 0 : i32
    %c0_i32_1 = arith.constant 0 : i32
    return %arg0, %arg1, %c0_i32, %c0_i32_0 : i32, i32, i32, i32
  }
}

module attributes {stable_mosaic.version = 11 : i64} {
  func.func @_bn_prelu_kernel(%arg0: i32, %arg1: i32, %arg2: memref<1x8x256xf32, #tpu.memory_space<vmem>>, %arg3: memref<8x1xf32, #tpu.memory_space<vmem>>, %arg4: memref<8x1xf32, #tpu.memory_space<vmem>>, %arg5: memref<1x1xf32, #tpu.memory_space<smem>>, %arg6: memref<1x8x256xf32, #tpu.memory_space<vmem>>) attributes {dimension_semantics = [#tpu.dimension_semantics<parallel>, #tpu.dimension_semantics<parallel>], iteration_bounds = array<i64: 2, 1>, scalar_prefetch = 0 : i64, scratch_operands = 0 : i64, tpu.core_type = #tpu.core_type<tc>, window_params = [{transform_indices = @transform_0, window_bounds = array<i64: 1, 8, 256>}, {pipeline_mode = #tpu.pipeline_mode<synchronous>, transform_indices = @transform_1, window_bounds = array<i64: 8, 1>}, {pipeline_mode = #tpu.pipeline_mode<synchronous>, transform_indices = @transform_2, window_bounds = array<i64: 8, 1>}, {transform_indices = @transform_3, window_bounds = array<i64: 1, 1>}, {transform_indices = @transform_4, window_bounds = array<i64: 1, 8, 256>}]} {
    %c0 = arith.constant 0 : index
    %c0_0 = arith.constant 0 : index
    %0 = vector.load %arg3[%c0, %c0_0] : memref<8x1xf32, #tpu.memory_space<vmem>>, vector<8x1xf32>
    %1 = vector.shape_cast %0 : vector<8x1xf32> to vector<1x8x1xf32>
    %c0_1 = arith.constant 0 : index
    %c0_2 = arith.constant 0 : index
    %2 = vector.load %arg4[%c0_1, %c0_2] : memref<8x1xf32, #tpu.memory_space<vmem>>, vector<8x1xf32>
    %3 = vector.shape_cast %2 : vector<8x1xf32> to vector<1x8x1xf32>
    %c0_3 = arith.constant 0 : index
    %c0_4 = arith.constant 0 : index
    %c0_5 = arith.constant 0 : index
    %4 = vector.load %arg2[%c0_3, %c0_4, %c0_5] : memref<1x8x256xf32, #tpu.memory_space<vmem>>, vector<1x8x256xf32>
    %5 = vector.broadcast %1 : vector<1x8x1xf32> to vector<1x8x256xf32>
    %6 = arith.mulf %4, %5 : vector<1x8x256xf32>
    %7 = vector.broadcast %3 : vector<1x8x1xf32> to vector<1x8x256xf32>
    %8 = arith.addf %6, %7 : vector<1x8x256xf32>
    %c0_6 = arith.constant 0 : index
    %c0_7 = arith.constant 0 : index
    %9 = memref.load %arg5[%c0_6, %c0_7] : memref<1x1xf32, #tpu.memory_space<smem>>
    %cst = arith.constant 0.000000e+00 : f32
    %10 = vector.broadcast %cst : f32 to vector<1x8x256xf32>
    %11 = arith.cmpf ogt, %8, %10 : vector<1x8x256xf32>
    %12 = vector.broadcast %9 : f32 to vector<1x8x256xf32>
    %13 = arith.mulf %12, %8 : vector<1x8x256xf32>
    %14 = arith.select %11, %8, %13 : vector<1x8x256xi1>, vector<1x8x256xf32>
    %c0_8 = arith.constant 0 : index
    %c0_9 = arith.constant 0 : index
    %c0_10 = arith.constant 0 : index
    %15 = vector.load %arg6[%c0_8, %c0_9, %c0_10] : memref<1x8x256xf32, #tpu.memory_space<vmem>>, vector<1x8x256xf32>
    tpu.vector_store %arg6[%c0_8, %c0_9, %c0_10], %14 {strides = array<i32>} : memref<1x8x256xf32, #tpu.memory_space<vmem>>, vector<1x8x256xf32>,
    return
  }
  func.func @transform_0(%arg0: i32, %arg1: i32) -> (i32, i32, i32) {
    %c0_i32 = arith.constant 0 : i32
    %c0_i32_0 = arith.constant 0 : i32
    return %arg0, %c0_i32, %arg1 : i32, i32, i32
  }
  func.func @transform_1(%arg0: i32, %arg1: i32) -> (i32, i32) {
    %c0_i32 = arith.constant 0 : i32
    %c0_i32_0 = arith.constant 0 : i32
    %c0_i32_1 = arith.constant 0 : i32
    return %c0_i32, %c0_i32_0 : i32, i32
  }
  func.func @transform_2(%arg0: i32, %arg1: i32) -> (i32, i32) {
    %c0_i32 = arith.constant 0 : i32
    %c0_i32_0 = arith.constant 0 : i32
    %c0_i32_1 = arith.constant 0 : i32
    return %c0_i32, %c0_i32_0 : i32, i32
  }
  func.func @transform_3(%arg0: i32, %arg1: i32) -> (i32, i32) {
    %c0_i32 = arith.constant 0 : i32
    %c0_i32_0 = arith.constant 0 : i32
    %c0_i32_1 = arith.constant 0 : i32
    return %c0_i32, %c0_i32_0 : i32, i32
  }
  func.func @transform_4(%arg0: i32, %arg1: i32) -> (i32, i32, i32) {
    %c0_i32 = arith.constant 0 : i32
    %c0_i32_0 = arith.constant 0 : i32
    return %arg0, %c0_i32, %arg1 : i32, i32, i32
  }
}

</mosaic_0001>

<llo_original>
// kernel: same_conv.3
$region0: #{same_conv.3}
  #allocation0 [shape = 'u32[]', space=smem, size = 0x4, offset = 0x4, fixed_abs, tag = 'smem constant byte address 0x4 - core index']
  #allocation1 [shape = 'u32[144,128]{1,0:T(1,128)}', space=vmem, size = 0x12000, scoped, tag = 'internal scratch']
  #allocation2 [shape = 'f32[1,1]{1,0:T(1,128)S(6)}', space=smem, size = 0x200, scoped, tag = 'scoped memory for same_conv.3']
  %s0 = inlined_call_operand.vmem [shape: f32[2,8,256], index: 0, kind: input, shape index: {}, may-alias: {0,4}]
  %s1 = inlined_call_operand.vmem [shape: f32[8,1], index: 1, kind: input, shape index: {}]
  %s2 = inlined_call_operand.vmem [shape: f32[8,1], index: 2, kind: input, shape index: {}]
  %s3 = inlined_call_operand.<no memory space> [shape: f32[1,1], index: 3, kind: input, shape index: {}]
  %s4 = inlined_call_operand.vmem [shape: f32[2,8,256], index: 4, kind: output, shape index: {}, may-alias: {0,4}]
  %s5 = sld [smem:[#allocation0]]
  $region49: #{same_conv.3} parent=0
    _
  %s7 = ssub.s32 1, %s5
  %s8 = scalar_select 0, %s7, %s5
  %9 = sst [smem:[#allocation2]] %s3
  loop: start=0, step=1, limit=4
  $region2: #{same_conv.3} parent=0 // loop_pre_header
    _
  $region3: #{same_conv.3} parent=0 // loop_header
    %s11 = sphi 0, %s15
    %p12 = scmp.ge.s32.totalorder %s11, 4
    %s18 = sphi 0, %s30
    %s19 = sphi 0, %s26
    %s20 = sphi 0, %s18
    %s21 = sphi 0, %s19
    %s22 = sphi 0, %s20
    %s23 = sphi 0, %s21
    %s35 = sphi 0, %s37
    %s38 = sphi 0, %s35
    %s39 = sphi 0, %s38
    %s55 = sphi 0, %s39
    %s59 = sphi 0, %s59
    %s61 = sphi 0, %s59
    %s62 = sphi 0, %s61
    %s76 = sphi 0, %s62
    %s80 = sphi 0, %s80
    %s82 = sphi 0, %s80
    %s83 = sphi 0, %s82
    %s97 = sphi 0, %s83
    %s101 = sphi 0, %s101
    %s103 = sphi 0, %s101
    %s104 = sphi 0, %s103
    %s118 = sphi 0, %s104
    %s126 = sphi 0, %s128
    %s129 = sphi 0, %s126
    %s130 = sphi 0, %s129
    %s146 = sphi 0, %s130
  $region4: #{same_conv.3} parent=0 // loop_header_branch
    %14 = sbr.rel (%p12) target = $region8
  $region5: #{same_conv.3} parent=0 // loop_body
    %s16 = ssub.s32 %s11, 1
    %s17 = ssub.s32 %s11, 2
    %s24 = sadd.s32 1, %s19
    %p25 = scmp.ge.s32.totalorder %s24, 1
    %s26 = scalar_select %p25, 0, %s24
    %s27 = sadd.s32 1, %s18
    %s28 = scalar_select %p25, %s27, %s18
    %p29 = scmp.ge.s32.totalorder %s28, 2
    %s30 = scalar_select %p29, 0, %s28
    %s31 = ssub.s32 %s18, %s30
    %s32 = ssub.s32 %s19, %s26
    %s33 = sor.u32 %s31, %s32
    %p34 = scmp.eq.s32.totalorder %s33, 0
    %s36 = sadd.s32 %s35, 1
    %s37 = scalar_select %p34, %s35, %s36
    %p40 = pneg %p34
    %p41 = scmp.eq.s32.totalorder %s11, 1
    %p42 = por %p40, %p41
    %p43 = scmp.ne.s32.totalorder %s35, %s38
    %p44 = scmp.eq.s32.totalorder %s11, 0
    %p45 = por %p43, %p44
    %p46 = scmp.ne.s32.totalorder %s35, %s38
    %p47 = scmp.eq.s32.totalorder %s16, 1
    %p48 = por %p46, %p47
    %p49 = scmp.ne.s32.totalorder %s38, %s39
    %p50 = scmp.eq.s32.totalorder %s16, 0
    %p51 = por %p49, %p50
    %p52 = scmp.ne.s32.totalorder %s38, %s39
    %p53 = scmp.eq.s32.totalorder %s17, 1
    %p54 = por %p52, %p53
    %p56 = scmp.ne.s32.totalorder %s39, %s55
    %p57 = scmp.eq.s32.totalorder %s17, 0
    %p58 = por %p56, %p57
    %s60 = sadd.s32 %s59, 1
    %p63 = scmp.eq.s32.totalorder %s11, 1
    %p64 = scmp.ne.s32.totalorder %s59, %s61
    %p65 = scmp.eq.s32.totalorder %s11, 0
    %p66 = por %p64, %p65
    %p67 = scmp.ne.s32.totalorder %s59, %s61
    %p68 = scmp.eq.s32.totalorder %s16, 1
    %p69 = por %p67, %p68
    %p70 = scmp.ne.s32.totalorder %s61, %s62
    %p71 = scmp.eq.s32.totalorder %s16, 0
    %p72 = por %p70, %p71
    %p73 = scmp.ne.s32.totalorder %s61, %s62
    %p74 = scmp.eq.s32.totalorder %s17, 1
    %p75 = por %p73, %p74
    %p77 = scmp.ne.s32.totalorder %s62, %s76
    %p78 = scmp.eq.s32.totalorder %s17, 0
    %p79 = por %p77, %p78
    %s81 = sadd.s32 %s80, 1
    %p84 = scmp.eq.s32.totalorder %s11, 1
    %p85 = scmp.ne.s32.totalorder %s80, %s82
    %p86 = scmp.eq.s32.totalorder %s11, 0
    %p87 = por %p85, %p86
    %p88 = scmp.ne.s32.totalorder %s80, %s82
    %p89 = scmp.eq.s32.totalorder %s16, 1
    %p90 = por %p88, %p89
    %p91 = scmp.ne.s32.totalorder %s82, %s83
    %p92 = scmp.eq.s32.totalorder %s16, 0
    %p93 = por %p91, %p92
    %p94 = scmp.ne.s32.totalorder %s82, %s83
    %p95 = scmp.eq.s32.totalorder %s17, 1
    %p96 = por %p94, %p95
    %p98 = scmp.ne.s32.totalorder %s83, %s97
    %p99 = scmp.eq.s32.totalorder %s17, 0
    %p100 = por %p98, %p99
    %s102 = sadd.s32 %s101, 1
    %p105 = scmp.eq.s32.totalorder %s11, 1
    %p106 = scmp.ne.s32.totalorder %s101, %s103
    %p107 = scmp.eq.s32.totalorder %s11, 0
    %p108 = por %p106, %p107
    %p109 = scmp.ne.s32.totalorder %s101, %s103
    %p110 = scmp.eq.s32.totalorder %s16, 1
    %p111 = por %p109, %p110
    %p112 = scmp.ne.s32.totalorder %s103, %s104
    %p113 = scmp.eq.s32.totalorder %s16, 0
    %p114 = por %p112, %p113
    %p115 = scmp.ne.s32.totalorder %s103, %s104
    %p116 = scmp.eq.s32.totalorder %s17, 1
    %p117 = por %p115, %p116
    %p119 = scmp.ne.s32.totalorder %s104, %s118
    %p120 = scmp.eq.s32.totalorder %s17, 0
    %p121 = por %p119, %p120
    %s122 = ssub.s32 %s18, %s30
    %s123 = ssub.s32 %s19, %s26
    %s124 = sor.u32 %s122, %s123
    %p125 = scmp.eq.s32.totalorder %s124, 0
    %s127 = sadd.s32 %s126, 1
    %s128 = scalar_select %p125, %s126, %s127
    %p131 = pneg %p125
    %p132 = scmp.eq.s32.totalorder %s11, 1
    %p133 = por %p131, %p132
    %p134 = scmp.ne.s32.totalorder %s126, %s129
    %p135 = scmp.eq.s32.totalorder %s11, 0
    %p136 = por %p134, %p135
    %p137 = scmp.ne.s32.totalorder %s126, %s129
    %p138 = scmp.eq.s32.totalorder %s16, 1
    %p139 = por %p137, %p138
    %p140 = scmp.ne.s32.totalorder %s129, %s130
    %p141 = scmp.eq.s32.totalorder %s16, 0
    %p142 = por %p140, %p141
    %p143 = scmp.ne.s32.totalorder %s129, %s130
    %p144 = scmp.eq.s32.totalorder %s17, 1
    %p145 = por %p143, %p144
    %p147 = scmp.ne.s32.totalorder %s130, %s146
    %p148 = scmp.eq.s32.totalorder %s17, 0
    %p149 = por %p147, %p148
    %p150 = scmp.le.s32.totalorder 1, %s11
    %p151 = scmp.lt.s32.totalorder %s11, 3
    %p152 = pnand %p150, %p151
    %p153 = pneg %p152
    // Predicated region
    $region9: #{same_conv.3} parent=5 // pred_check
      _
    $region10: #{same_conv.3} parent=5 // pred_check_branch
      %155 = sbr.rel (%p152) target = $region12
    $region11: #{same_conv.3} parent=5 // pred_region
      %s156 = ssub.s32 %s11, 1
      // Predicated region
      $region13: #{same_conv.3} parent=11 // pred_check
        %p157 = pneg %p72
      $region14: #{same_conv.3} parent=11 // pred_check_branch
        %159 = sbr.rel (%p157) target = $region16
      $region15: #{same_conv.3} parent=11 // pred_region
        _
      $region16: #{same_conv.3} parent=11 // pred_fallthru
        _
      // Predicated region
      $region17: #{same_conv.3} parent=11 // pred_check
        %p160 = pneg %p93
      $region18: #{same_conv.3} parent=11 // pred_check_branch
        %162 = sbr.rel (%p160) target = $region20
      $region19: #{same_conv.3} parent=11 // pred_region
        _
      $region20: #{same_conv.3} parent=11 // pred_fallthru
        _
      // Predicated region
      $region21: #{same_conv.3} parent=11 // pred_check
        %p163 = pneg %p114
      $region22: #{same_conv.3} parent=11 // pred_check_branch
        %165 = sbr.rel (%p163) target = $region24
      $region23: #{same_conv.3} parent=11 // pred_region
        _
      $region24: #{same_conv.3} parent=11 // pred_fallthru
        _
    $region12: #{same_conv.3} parent=5 // pred_fallthru
      _
    %p166 = scmp.lt.s32.totalorder %s11, 2
    // Predicated region
    $region25: #{same_conv.3} parent=5 // pred_check
      %p167 = pneg %p166
    $region26: #{same_conv.3} parent=5 // pred_check_branch
      %169 = sbr.rel (%p167) target = $region28
    $region27: #{same_conv.3} parent=5 // pred_region
      // Predicated region
      $region29: #{same_conv.3} parent=27 // pred_check
        %p170 = pneg %p45
      $region30: #{same_conv.3} parent=27 // pred_check_branch
        %172 = sbr.rel (%p170) target = $region32
      $region31: #{same_conv.3} parent=27 // pred_region
        %s173 = smul.u32 2, %s19
        %p174 = scmp.lt.s32.totalorder %s18, 1
        %s175 = scalar_select %p174, %s18, 1
        %p176 = scmp.lt.s32.totalorder %s173, 1
        %s177 = scalar_select %p176, %s173, 1
        %s178 = smul.addr %s175, 2
        %s179 = sadd.s32 %s177, %s178
        %s180 = smul.addr %s179, 8
        %s181 = scalar_lea.vmem %s0, %s180
        %s182 = smul.u32 2, %s19
      $region32: #{same_conv.3} parent=27 // pred_fallthru
        _
    $region28: #{same_conv.3} parent=5 // pred_fallthru
      _
    %p183 = scmp.le.s32.totalorder 1, %s11
    %p184 = scmp.lt.s32.totalorder %s11, 3
    %p185 = pnand %p183, %p184
    %p186 = pneg %p185
    // Predicated region
    $region33: #{same_conv.3} parent=5 // pred_check
      _
    $region34: #{same_conv.3} parent=5 // pred_check_branch
      %188 = sbr.rel (%p185) target = $region36
    $region35: #{same_conv.3} parent=5 // pred_region
      %s189 = ssub.s32 %s11, 1
      %s190 = smul.u32 2, %s21
      %p191 = scmp.lt.s32.totalorder %s20, 1
      %s192 = scalar_select %p191, %s20, 1
      %p193 = scmp.lt.s32.totalorder %s190, 1
      %s194 = scalar_select %p193, %s190, 1
      %s195 = smul.addr %s192, 2
      %s196 = sadd.s32 %s194, %s195
      %s197 = smul.addr %s196, 8
      %s198 = scalar_lea.vmem %s0, %s197
      %p199 = pneg %p51
      %p200 = pneg %p48
      %p201 = pneg %p72
      %p202 = pneg %p69
      %p203 = pneg %p93
      %p204 = pneg %p90
      %p205 = pneg %p114
      %p206 = pneg %p111
      %p207 = pneg %p142
      %p208 = pneg %p139
      %s209 = smul.u32 2, %s21
      %p210 = scmp.lt.s32.totalorder %s20, 1
      %s211 = scalar_select %p210, %s20, 1
      %p212 = scmp.lt.s32.totalorder %s209, 1
      %s213 = scalar_select %p212, %s209, 1
      %s214 = smul.addr %s211, 2
      %s215 = sadd.s32 %s213, %s214
      %s216 = smul.addr %s215, 8
      %s217 = scalar_lea.vmem %s4, %s216
      %s218 = smul.u32 2, %s21
      %p219 = scmp.lt.s32.totalorder %s20, 1
      %s220 = scalar_select %p219, %s20, 1
      %p221 = scmp.lt.s32.totalorder %s218, 1
      %s222 = scalar_select %p221, %s218, 1
      %s223 = smul.addr %s220, 2
      %s224 = sadd.s32 %s222, %s223
      %s225 = smul.addr %s224, 8
      %s226 = scalar_lea.vmem %s0, %s225
      %s227 = smul.u32 2, %s21
      %s228 = smul.u32 2, %s21
      %p229 = scmp.lt.s32.totalorder %s20, 1
      %s230 = scalar_select %p229, %s20, 1
      %p231 = scmp.lt.s32.totalorder %s228, 1
      %s232 = scalar_select %p231, %s228, 1
      %s233 = smul.addr %s230, 2
      %s234 = sadd.s32 %s232, %s233
      %s235 = smul.addr %s234, 8
      %s236 = scalar_lea.vmem %s4, %s235
      %s237 = smul.u32 2, %s21
      %v238 = vld [vmem:[%s1] sm:$0xff]
      %v239 = vld [vmem:[%s2] sm:$0xff]
      %v240 = vld [vmem:[%s226] sm:$0xff]
      %v241 = vld [vmem:[%s226 + $0x8] sm:$0xff]
      %243 = vset.pattern.permute.xlu0 0
      %244 = vperm.xlu0 %243, %v238
      %v245 = vpop.permute.xlu0 %244
      %v247 = vmul.f32 %v240, %v245
      %v248 = vmul.f32 %v241, %v245
      %250 = vset.pattern.permute.xlu0 0
      %251 = vperm.xlu0 %250, %v239
      %v252 = vpop.permute.xlu0 %251
      %v254 = vadd.f32 %v247, %v252
      %v255 = vadd.f32 %v248, %v252
      %s256 = sld [smem:[#allocation2]]
      %vm257 = vcmp.gt.f32.partialorder %v254, 0.0
      %vm258 = vcmp.gt.f32.partialorder %v255, 0.0
      %v259 = vstv %s256
      %v260 = vmul.f32 %v259, %v254
      %v261 = vmul.f32 %v259, %v255
      %v262 = vsel %vm257, %v254, %v260
      %v263 = vsel %vm258, %v255, %v261
      %264 = vst [vmem:[%s236] sm:$0xff] %v262
      %265 = vst [vmem:[%s236 + $0x8] sm:$0xff] %v263
      %s266 = smul.u32 2, %s21
      %p267 = scmp.lt.s32.totalorder %s20, 1
      %s268 = scalar_select %p267, %s20, 1
      %p269 = scmp.lt.s32.totalorder %s266, 1
      %s270 = scalar_select %p269, %s266, 1
      %s271 = smul.addr %s268, 2
      %s272 = sadd.s32 %s270, %s271
      %s273 = smul.addr %s272, 8
      %s274 = scalar_lea.vmem %s4, %s273
      // Predicated region
      $region37: #{same_conv.3} parent=35 // pred_check
        %p275 = pneg %p139
      $region38: #{same_conv.3} parent=35 // pred_check_branch
        %277 = sbr.rel (%p275) target = $region40
      $region39: #{same_conv.3} parent=35 // pred_region
        %s278 = smul.u32 2, %s21
      $region40: #{same_conv.3} parent=35 // pred_fallthru
        _
    $region36: #{same_conv.3} parent=5 // pred_fallthru
      _
    %p279 = scmp.le.s32.totalorder 2, %s11
    // Predicated region
    $region41: #{same_conv.3} parent=5 // pred_check
      %p280 = pneg %p279
    $region42: #{same_conv.3} parent=5 // pred_check_branch
      %282 = sbr.rel (%p280) target = $region44
    $region43: #{same_conv.3} parent=5 // pred_region
      %s283 = ssub.s32 %s11, 2
      // Predicated region
      $region45: #{same_conv.3} parent=43 // pred_check
        %p284 = pneg %p145
      $region46: #{same_conv.3} parent=43 // pred_check_branch
        %286 = sbr.rel (%p284) target = $region48
      $region47: #{same_conv.3} parent=43 // pred_region
        %s287 = smul.u32 2, %s23
        %p288 = scmp.lt.s32.totalorder %s22, 1
        %s289 = scalar_select %p288, %s22, 1
        %p290 = scmp.lt.s32.totalorder %s287, 1
        %s291 = scalar_select %p290, %s287, 1
        %s292 = smul.addr %s289, 2
        %s293 = sadd.s32 %s291, %s292
        %s294 = smul.addr %s293, 8
        %s295 = scalar_lea.vmem %s4, %s294
      $region48: #{same_conv.3} parent=43 // pred_fallthru
        _
    $region44: #{same_conv.3} parent=5 // pred_fallthru
      _
  $region6: #{same_conv.3} parent=0 // loop_footer
    %s15 = sadd.s32 1, %s11
  $region7: #{same_conv.3} parent=0 // loop_footer_branch
    %10 = sbr.rel target = $region3
  $region8: #{same_conv.3} parent=0 // loop_exit
    _

// kernel: same_conv.2
$region0: #{same_conv.2}
  #allocation0 [shape = 'u32[]', space=smem, size = 0x4, offset = 0x4, fixed_abs, tag = 'smem constant byte address 0x4 - core index']
  #allocation1 [shape = 'u32[144,128]{1,0:T(1,128)}', space=vmem, size = 0x12000, scoped, tag = 'internal scratch']
  %s0 = inlined_call_operand.vmem [shape: f32[2,1,4,290], index: 0, kind: input, shape index: {}]
  %s1 = inlined_call_operand.vmem [shape: f32[8,36], index: 1, kind: input, shape index: {}]
  %s2 = inlined_call_operand.vmem [shape: f32[2,8,256], index: 2, kind: output, shape index: {0}]
  %s3 = inlined_call_operand.vmem [shape: f32[2,1,8,1], index: 3, kind: output, shape index: {1}]
  %s4 = inlined_call_operand.vmem [shape: f32[2,1,8,1], index: 4, kind: output, shape index: {2}]
  %5 = xla_tuple %s2, %s3, %s4
  %s6 = sld [smem:[#allocation0]]
  $region57: #{same_conv.2} parent=0
    _
  %s8 = ssub.s32 1, %s6
  %s9 = scalar_select 0, %s8, %s6
  loop: start=0, step=1, limit=4
  $region2: #{same_conv.2} parent=0 // loop_pre_header
    _
  $region3: #{same_conv.2} parent=0 // loop_header
    %s11 = sphi 0, %s15
    %p12 = scmp.ge.s32.totalorder %s11, 4
    %s18 = sphi 0, %s30
    %s19 = sphi 0, %s26
    %s20 = sphi 0, %s18
    %s21 = sphi 0, %s19
    %s22 = sphi 0, %s20
    %s23 = sphi 0, %s21
    %s35 = sphi 0, %s37
    %s38 = sphi 0, %s35
    %s39 = sphi 0, %s38
    %s55 = sphi 0, %s39
    %s59 = sphi 0, %s59
    %s61 = sphi 0, %s59
    %s62 = sphi 0, %s61
    %s76 = sphi 0, %s62
    %s84 = sphi 0, %s86
    %s87 = sphi 0, %s84
    %s88 = sphi 0, %s87
    %s104 = sphi 0, %s88
    %s112 = sphi 0, %s114
    %s115 = sphi 0, %s112
    %s116 = sphi 0, %s115
    %s132 = sphi 0, %s116
    %s140 = sphi 0, %s142
    %s143 = sphi 0, %s140
    %s144 = sphi 0, %s143
    %s160 = sphi 0, %s144
  $region4: #{same_conv.2} parent=0 // loop_header_branch
    %14 = sbr.rel (%p12) target = $region8
  $region5: #{same_conv.2} parent=0 // loop_body
    %s16 = ssub.s32 %s11, 1
    %s17 = ssub.s32 %s11, 2
    %s24 = sadd.s32 1, %s19
    %p25 = scmp.ge.s32.totalorder %s24, 1
    %s26 = scalar_select %p25, 0, %s24
    %s27 = sadd.s32 1, %s18
    %s28 = scalar_select %p25, %s27, %s18
    %p29 = scmp.ge.s32.totalorder %s28, 2
    %s30 = scalar_select %p29, 0, %s28
    %s31 = ssub.s32 %s18, %s30
    %s32 = ssub.s32 %s19, %s26
    %s33 = sor.u32 %s31, %s32
    %p34 = scmp.eq.s32.totalorder %s33, 0
    %s36 = sadd.s32 %s35, 1
    %s37 = scalar_select %p34, %s35, %s36
    %p40 = pneg %p34
    %p41 = scmp.eq.s32.totalorder %s11, 1
    %p42 = por %p40, %p41
    %p43 = scmp.ne.s32.totalorder %s35, %s38
    %p44 = scmp.eq.s32.totalorder %s11, 0
    %p45 = por %p43, %p44
    %p46 = scmp.ne.s32.totalorder %s35, %s38
    %p47 = scmp.eq.s32.totalorder %s16, 1
    %p48 = por %p46, %p47
    %p49 = scmp.ne.s32.totalorder %s38, %s39
    %p50 = scmp.eq.s32.totalorder %s16, 0
    %p51 = por %p49, %p50
    %p52 = scmp.ne.s32.totalorder %s38, %s39
    %p53 = scmp.eq.s32.totalorder %s17, 1
    %p54 = por %p52, %p53
    %p56 = scmp.ne.s32.totalorder %s39, %s55
    %p57 = scmp.eq.s32.totalorder %s17, 0
    %p58 = por %p56, %p57
    %s60 = sadd.s32 %s59, 1
    %p63 = scmp.eq.s32.totalorder %s11, 1
    %p64 = scmp.ne.s32.totalorder %s59, %s61
    %p65 = scmp.eq.s32.totalorder %s11, 0
    %p66 = por %p64, %p65
    %p67 = scmp.ne.s32.totalorder %s59, %s61
    %p68 = scmp.eq.s32.totalorder %s16, 1
    %p69 = por %p67, %p68
    %p70 = scmp.ne.s32.totalorder %s61, %s62
    %p71 = scmp.eq.s32.totalorder %s16, 0
    %p72 = por %p70, %p71
    %p73 = scmp.ne.s32.totalorder %s61, %s62
    %p74 = scmp.eq.s32.totalorder %s17, 1
    %p75 = por %p73, %p74
    %p77 = scmp.ne.s32.totalorder %s62, %s76
    %p78 = scmp.eq.s32.totalorder %s17, 0
    %p79 = por %p77, %p78
    %s80 = ssub.s32 %s18, %s30
    %s81 = ssub.s32 %s19, %s26
    %s82 = sor.u32 %s80, %s81
    %p83 = scmp.eq.s32.totalorder %s82, 0
    %s85 = sadd.s32 %s84, 1
    %s86 = scalar_select %p83, %s84, %s85
    %p89 = pneg %p83
    %p90 = scmp.eq.s32.totalorder %s11, 1
    %p91 = por %p89, %p90
    %p92 = scmp.ne.s32.totalorder %s84, %s87
    %p93 = scmp.eq.s32.totalorder %s11, 0
    %p94 = por %p92, %p93
    %p95 = scmp.ne.s32.totalorder %s84, %s87
    %p96 = scmp.eq.s32.totalorder %s16, 1
    %p97 = por %p95, %p96
    %p98 = scmp.ne.s32.totalorder %s87, %s88
    %p99 = scmp.eq.s32.totalorder %s16, 0
    %p100 = por %p98, %p99
    %p101 = scmp.ne.s32.totalorder %s87, %s88
    %p102 = scmp.eq.s32.totalorder %s17, 1
    %p103 = por %p101, %p102
    %p105 = scmp.ne.s32.totalorder %s88, %s104
    %p106 = scmp.eq.s32.totalorder %s17, 0
    %p107 = por %p105, %p106
    %s108 = ssub.s32 %s18, %s30
    %s109 = ssub.s32 %s19, %s26
    %s110 = sor.u32 %s108, %s109
    %p111 = scmp.eq.s32.totalorder %s110, 0
    %s113 = sadd.s32 %s112, 1
    %s114 = scalar_select %p111, %s112, %s113
    %p117 = pneg %p111
    %p118 = scmp.eq.s32.totalorder %s11, 1
    %p119 = por %p117, %p118
    %p120 = scmp.ne.s32.totalorder %s112, %s115
    %p121 = scmp.eq.s32.totalorder %s11, 0
    %p122 = por %p120, %p121
    %p123 = scmp.ne.s32.totalorder %s112, %s115
    %p124 = scmp.eq.s32.totalorder %s16, 1
    %p125 = por %p123, %p124
    %p126 = scmp.ne.s32.totalorder %s115, %s116
    %p127 = scmp.eq.s32.totalorder %s16, 0
    %p128 = por %p126, %p127
    %p129 = scmp.ne.s32.totalorder %s115, %s116
    %p130 = scmp.eq.s32.totalorder %s17, 1
    %p131 = por %p129, %p130
    %p133 = scmp.ne.s32.totalorder %s116, %s132
    %p134 = scmp.eq.s32.totalorder %s17, 0
    %p135 = por %p133, %p134
    %s136 = ssub.s32 %s18, %s30
    %s137 = ssub.s32 %s19, %s26
    %s138 = sor.u32 %s136, %s137
    %p139 = scmp.eq.s32.totalorder %s138, 0
    %s141 = sadd.s32 %s140, 1
    %s142 = scalar_select %p139, %s140, %s141
    %p145 = pneg %p139
    %p146 = scmp.eq.s32.totalorder %s11, 1
    %p147 = por %p145, %p146
    %p148 = scmp.ne.s32.totalorder %s140, %s143
    %p149 = scmp.eq.s32.totalorder %s11, 0
    %p150 = por %p148, %p149
    %p151 = scmp.ne.s32.totalorder %s140, %s143
    %p152 = scmp.eq.s32.totalorder %s16, 1
    %p153 = por %p151, %p152
    %p154 = scmp.ne.s32.totalorder %s143, %s144
    %p155 = scmp.eq.s32.totalorder %s16, 0
    %p156 = por %p154, %p155
    %p157 = scmp.ne.s32.totalorder %s143, %s144
    %p158 = scmp.eq.s32.totalorder %s17, 1
    %p159 = por %p157, %p158
    %p161 = scmp.ne.s32.totalorder %s144, %s160
    %p162 = scmp.eq.s32.totalorder %s17, 0
    %p163 = por %p161, %p162
    %p164 = scmp.le.s32.totalorder 1, %s11
    %p165 = scmp.lt.s32.totalorder %s11, 3
    %p166 = pnand %p164, %p165
    %p167 = pneg %p166
    // Predicated region
    $region9: #{same_conv.2} parent=5 // pred_check
      _
    $region10: #{same_conv.2} parent=5 // pred_check_branch
      %169 = sbr.rel (%p166) target = $region12
    $region11: #{same_conv.2} parent=5 // pred_region
      %s170 = ssub.s32 %s11, 1
      // Predicated region
      $region13: #{same_conv.2} parent=11 // pred_check
        %p171 = pneg %p72
      $region14: #{same_conv.2} parent=11 // pred_check_branch
        %173 = sbr.rel (%p171) target = $region16
      $region15: #{same_conv.2} parent=11 // pred_region
        _
      $region16: #{same_conv.2} parent=11 // pred_fallthru
        _
    $region12: #{same_conv.2} parent=5 // pred_fallthru
      _
    %p174 = scmp.lt.s32.totalorder %s11, 2
    // Predicated region
    $region17: #{same_conv.2} parent=5 // pred_check
      %p175 = pneg %p174
    $region18: #{same_conv.2} parent=5 // pred_check_branch
      %177 = sbr.rel (%p175) target = $region20
    $region19: #{same_conv.2} parent=5 // pred_region
      // Predicated region
      $region21: #{same_conv.2} parent=19 // pred_check
        %p178 = pneg %p45
      $region22: #{same_conv.2} parent=19 // pred_check_branch
        %180 = sbr.rel (%p178) target = $region24
      $region23: #{same_conv.2} parent=19 // pred_region
        %p181 = scmp.lt.s32.totalorder %s18, 1
        %s182 = scalar_select %p181, %s18, 1
        %p183 = scmp.lt.s32.totalorder %s19, 0
        %s184 = scalar_select %p183, %s19, 0
        %s185 = smul.addr %s184, 3
        %s186 = smul.addr %s182, 3
        %s187 = sadd.s32 %s185, %s186
        %s188 = smul.addr %s187, 4
        %s189 = scalar_lea.vmem %s0, %s188
      $region24: #{same_conv.2} parent=19 // pred_fallthru
        _
    $region20: #{same_conv.2} parent=5 // pred_fallthru
      _
    %p190 = scmp.le.s32.totalorder 1, %s11
    %p191 = scmp.lt.s32.totalorder %s11, 3
    %p192 = pnand %p190, %p191
    %p193 = pneg %p192
    // Predicated region
    $region25: #{same_conv.2} parent=5 // pred_check
      _
    $region26: #{same_conv.2} parent=5 // pred_check_branch
      %195 = sbr.rel (%p192) target = $region28
    $region27: #{same_conv.2} parent=5 // pred_region
      %s196 = ssub.s32 %s11, 1
      %p197 = scmp.lt.s32.totalorder %s20, 1
      %s198 = scalar_select %p197, %s20, 1
      %p199 = scmp.lt.s32.totalorder %s21, 0
      %s200 = scalar_select %p199, %s21, 0
      %s201 = smul.addr %s200, 3
      %s202 = smul.addr %s198, 3
      %s203 = sadd.s32 %s201, %s202
      %s204 = smul.addr %s203, 4
      %s205 = scalar_lea.vmem %s0, %s204
      %p206 = pneg %p51
      %p207 = pneg %p48
      %p208 = pneg %p72
      %p209 = pneg %p69
      %p210 = pneg %p100
      %p211 = pneg %p97
      %s212 = smul.u32 2, %s21
      %p213 = scmp.lt.s32.totalorder %s20, 1
      %s214 = scalar_select %p213, %s20, 1
      %p215 = scmp.lt.s32.totalorder %s212, 1
      %s216 = scalar_select %p215, %s212, 1
      %s217 = smul.addr %s214, 2
      %s218 = sadd.s32 %s216, %s217
      %s219 = smul.addr %s218, 8
      %s220 = scalar_lea.vmem %s2, %s219
      %p221 = pneg %p128
      %p222 = pneg %p125
      %p223 = scmp.lt.s32.totalorder %s20, 1
      %s224 = scalar_select %p223, %s20, 1
      %p225 = scmp.lt.s32.totalorder %s21, 0
      %s226 = scalar_select %p225, %s21, 0
      %s227 = sadd.s32 %s226, %s224
      %s228 = smul.addr %s227, 8
      %s229 = scalar_lea.vmem %s3, %s228
      %p230 = pneg %p156
      %p231 = pneg %p153
      %p232 = scmp.lt.s32.totalorder %s20, 1
      %s233 = scalar_select %p232, %s20, 1
      %p234 = scmp.lt.s32.totalorder %s21, 0
      %s235 = scalar_select %p234, %s21, 0
      %s236 = sadd.s32 %s235, %s233
      %s237 = smul.addr %s236, 8
      %s238 = scalar_lea.vmem %s4, %s237
      %p239 = scmp.lt.s32.totalorder %s20, 1
      %s240 = scalar_select %p239, %s20, 1
      %p241 = scmp.lt.s32.totalorder %s21, 0
      %s242 = scalar_select %p241, %s21, 0
      %s243 = smul.addr %s242, 3
      %s244 = smul.addr %s240, 3
      %s245 = sadd.s32 %s243, %s244
      %s246 = smul.addr %s245, 4
      %s247 = scalar_lea.vmem %s0, %s246
      %s248 = smul.u32 2, %s21
      %p249 = scmp.lt.s32.totalorder %s20, 1
      %s250 = scalar_select %p249, %s20, 1
      %p251 = scmp.lt.s32.totalorder %s248, 1
      %s252 = scalar_select %p251, %s248, 1
      %s253 = smul.addr %s250, 2
      %s254 = sadd.s32 %s252, %s253
      %s255 = smul.addr %s254, 8
      %s256 = scalar_lea.vmem %s2, %s255
      %s257 = smul.u32 2, %s21
      %p258 = scmp.lt.s32.totalorder %s20, 1
      %s259 = scalar_select %p258, %s20, 1
      %p260 = scmp.lt.s32.totalorder %s21, 0
      %s261 = scalar_select %p260, %s21, 0
      %s262 = sadd.s32 %s261, %s259
      %s263 = smul.addr %s262, 8
      %s264 = scalar_lea.vmem %s3, %s263
      %p265 = scmp.lt.s32.totalorder %s20, 1
      %s266 = scalar_select %p265, %s20, 1
      %p267 = scmp.lt.s32.totalorder %s21, 0
      %s268 = scalar_select %p267, %s21, 0
      %s269 = sadd.s32 %s268, %s266
      %s270 = smul.addr %s269, 8
      %s271 = scalar_lea.vmem %s4, %s270
      %v272 = vld [vmem:[%s247] sm:$0xff]
      %v273 = vld [vmem:[%s247 + $0x8] sm:$0xf]
      %v274 = vlaneseq
      %v275 = vand.u32 %v274, 127
      %276 = vrot.lane.b32.xlu0 %v275, 16
      %v277 = vpop.permute.xlu0 %276
      %278 = vrot.lane.b32.xlu0 %v275, 32
      %v279 = vpop.permute.xlu0 %278
      %280 = vrot.lane.b32.xlu0 %v275, 48
      %v281 = vpop.permute.xlu0 %280
      %282 = vrot.lane.b32.xlu0 %v275, 64
      %v283 = vpop.permute.xlu0 %282
      %284 = vrot.lane.b32.xlu0 %v275, 80
      %v285 = vpop.permute.xlu0 %284
      %286 = vrot.lane.b32.xlu0 %v275, 96
      %v287 = vpop.permute.xlu0 %286
      %288 = vrot.lane.b32.xlu0 %v275, 112
      %v289 = vpop.permute.xlu0 %288
      %vm290 = vcmask 130048
      %v291 = vsel %vm290, %v275, %v277
      %vm292 = vcmask 261120
      %v293 = vsel %vm292, %v291, %v279
      %vm294 = vcmask 392192
      %v295 = vsel %vm294, %v293, %v281
      %vm296 = vcmask 523264
      %v297 = vsel %vm296, %v295, %v283
      %vm298 = vcmask 654336
      %v299 = vsel %vm298, %v297, %v285
      %vm300 = vcmask 785408
      %v301 = vsel %vm300, %v299, %v287
      %vm302 = vcmask 916480
      %v303 = vsel %vm302, %v301, %v289
      %vm304 = vcmp.eq.s32.totalorder %v303, 0
      %vm305 = vcmp.eq.s32.totalorder %v303, 15
      %v306 = vsel %vm304, 1, 0
      %v307 = vlaneseq
      %v308 = vshrl.u32 %v307, 7
      %v309 = vsub.s32 0, %v308
      %v310 = vrot.slane %v306, %v309
      %vm311 = vcmp.eq.s32.totalorder %v310, 1
      %v314 = vcombine.high %v272, %v272
      %315 = vrot.lane.b32.xlu0 %v272, 126
      %v316 = vpop.permute.xlu0 %315
      %317 = vrot.lane.b32.xlu0 %v314, 126
      %v318 = vpop.permute.xlu0 %317
      %319 = vrot.lane.b32.xlu0 %v273, 126
      %v320 = vpop.permute.xlu0 %319
      %vm321 = vcmask 1031168
      %v322 = vsel %vm321, %v316, %v318
      %v323 = vsel %vm321, %v318, %v320
      %v327 = vsel %vm311, %v322, %v272
      %v328 = vsel %vm311, %v323, %v314
      %v329 = vsel %vm305, 1, 0
      %v330 = vlaneseq
      %v331 = vshrl.u32 %v330, 7
      %v332 = vsub.s32 0, %v331
      %v333 = vrot.slane %v329, %v332
      %vm334 = vcmp.eq.s32.totalorder %v333, 1
      %v335 = vsel %vm334, %v272, %v322
      %v336 = vsel %vm334, %v314, %v323
      %337 = vrot.lane.b32.xlu0 %v272, 110
      %v338 = vpop.permute.xlu0 %337
      %339 = vrot.lane.b32.xlu0 %v314, 110
      %v340 = vpop.permute.xlu0 %339
      %341 = vrot.lane.b32.xlu0 %v273, 110
      %v342 = vpop.permute.xlu0 %341
      %vm343 = vcmask 900096
      %v344 = vsel %vm343, %v338, %v340
      %v345 = vsel %vm343, %v340, %v342
      %348 = vrot.lane.b32.xlu0 %v272, 112
      %v349 = vpop.permute.xlu0 %348
      %350 = vrot.lane.b32.xlu0 %v314, 112
      %v351 = vpop.permute.xlu0 %350
      %352 = vrot.lane.b32.xlu0 %v273, 112
      %v353 = vpop.permute.xlu0 %352
      %v354 = vsel %vm302, %v349, %v351
      %v355 = vsel %vm302, %v351, %v353
      %v358 = vsel %vm311, %v344, %v354
      %v359 = vsel %vm311, %v345, %v355
      %v360 = vsel %vm334, %v354, %v344
      %v361 = vsel %vm334, %v355, %v345
      %362 = vrot.lane.b32.xlu0 %v272, 94
      %v363 = vpop.permute.xlu0 %362
      %364 = vrot.lane.b32.xlu0 %v314, 94
      %v365 = vpop.permute.xlu0 %364
      %366 = vrot.lane.b32.xlu0 %v273, 94
      %v367 = vpop.permute.xlu0 %366
      %vm368 = vcmask 769024
      %v369 = vsel %vm368, %v363, %v365
      %v370 = vsel %vm368, %v365, %v367
      %373 = vrot.lane.b32.xlu0 %v272, 96
      %v374 = vpop.permute.xlu0 %373
      %375 = vrot.lane.b32.xlu0 %v314, 96
      %v376 = vpop.permute.xlu0 %375
      %377 = vrot.lane.b32.xlu0 %v273, 96
      %v378 = vpop.permute.xlu0 %377
      %v379 = vsel %vm300, %v374, %v376
      %v380 = vsel %vm300, %v376, %v378
      %v383 = vsel %vm311, %v369, %v379
      %v384 = vsel %vm311, %v370, %v380
      %v385 = vsel %vm334, %v379, %v369
      %v386 = vsel %vm334, %v380, %v370
      %v387 = vcombine.low %v272, %v272
      %v388 = vcombine.low %v273, %v273
      %389 = vrot.lane.b32.xlu0 %v387, 127
      %v390 = vpop.permute.xlu0 %389
      %391 = vrot.lane.b32.xlu0 %v272, 127
      %v392 = vpop.permute.xlu0 %391
      %393 = vrot.lane.b32.xlu0 %v388, 127
      %v394 = vpop.permute.xlu0 %393
      %vm395 = vcmask 1039360
      %v396 = vsel %vm395, %v390, %v392
      %v397 = vsel %vm395, %v392, %v394
      %v402 = vrot.slane %v358, 4
      %v403 = vrot.slane %v359, 4
      %406 = vrot.lane.b32.xlu0 %v272, 111
      %v407 = vpop.permute.xlu0 %406
      %408 = vrot.lane.b32.xlu0 %v314, 111
      %v409 = vpop.permute.xlu0 %408
      %410 = vrot.lane.b32.xlu0 %v273, 111
      %v411 = vpop.permute.xlu0 %410
      %vm412 = vcmask 908288
      %v413 = vsel %vm412, %v407, %v409
      %v414 = vsel %vm412, %v409, %v411
      %v419 = vrot.slane %v360, 4
      %v420 = vrot.slane %v361, 4
      %423 = vrot.lane.b32.xlu0 %v387, 95
      %v424 = vpop.permute.xlu0 %423
      %425 = vrot.lane.b32.xlu0 %v272, 95
      %v426 = vpop.permute.xlu0 %425
      %427 = vrot.lane.b32.xlu0 %v388, 95
      %v428 = vpop.permute.xlu0 %427
      %vm429 = vcmask 777216
      %v430 = vsel %vm429, %v424, %v426
      %v431 = vsel %vm429, %v426, %v428
      %vm434 = vcmask 1043456
      %v435 = vsel %vm434, %v327, %v396
      %v436 = vsel %vm434, %v328, %v397
      %v437 = vsel %vm434, %v335, %v402
      %v438 = vsel %vm434, %v336, %v403
      %v439 = vsel %vm434, %v413, %v419
      %v440 = vsel %vm434, %v414, %v420
      %v441 = vsel %vm434, %v383, %v430
      %v442 = vsel %vm434, %v384, %v431
      %v443 = vld [vmem:[%s1] sm:$0xff]
      %vm444 = vcmask 293888
      %v446 = vsel %vm444, %v443, 0
      %v449 = vsel %vm434, %v385, 0
      %v452 = vsel %vm434, %v386, 0
      %454 = vmatprep.subr.mxu0 %v436
      %455 = vmatpush1.msra.mxu0 %v435
      %456 = vmatprep.subr.mxu0 %v438
      %457 = vmatpush1.msra.mxu0 %v437
      %458 = vmatprep.subr.mxu0 %v440
      %459 = vmatpush1.msra.mxu0 %v439
      %460 = vmatprep.subr.mxu0 %v442
      %461 = vmatpush1.msra.mxu0 %v441
      %462 = vmatprep.subr.mxu0 %v452
      %463 = vmatpush1.msra.mxu0 %v449
      %464 = vmatprep.subr.mxu0 0.0
      %465 = vmatpush1.msra.mxu0 0.0
      %466 = vmatprep.subr.mxu0 0.0
      %467 = vmatpush1.msra.mxu0 0.0
      %468 = vmatprep.subr.mxu0 0.0
      %469 = vmatpush1.msra.mxu0 0.0
      %470 = vmatprep.subr.mxu0 0.0
      %471 = vmatpush1.msra.mxu0 0.0
      %472 = vmatprep.subr.mxu0 0.0
      %473 = vmatpush1.msra.mxu0 0.0
      %474 = vmatprep.subr.mxu0 0.0
      %475 = vmatpush1.msra.mxu0 0.0
      %476 = vmatprep.subr.mxu0 0.0
      %477 = vmatpush1.msra.mxu0 0.0
      %478 = vmatprep.subr.mxu0 0.0
      %479 = vmatpush1.msra.mxu0 0.0
      %480 = vmatprep.subr.mxu0 0.0
      %481 = vmatpush1.msra.mxu0 0.0
      %482 = vmatprep.subr.mxu0 0.0
      %483 = vmatpush1.msra.mxu0 0.0
      %484 = vmatprep.subr.mxu0 0.0
      %485 = vmatpush1.msra.mxu0 0.0
      %486 = vmatprep.subr.mxu0 0.0
      %487 = vmatpush1.msra.mxu0 0.0
      %488 = vmatprep.subr.mxu0 0.0
      %489 = vmatpush1.msra.mxu0 0.0
      %490 = vmatprep.subr.mxu0 0.0
      %491 = vmatpush1.msra.mxu0 0.0
      %492 = vmatprep.subr.mxu0 0.0
      %493 = vmatpush1.msra.mxu0 0.0
      %494 = vmatprep.subr.mxu0 0.0
      %495 = vmatpush1.msra.mxu0 0.0
      %496 = vmatprep.subr.mxu0 0.0
      %497 = vmatpush1.msra.mxu0 0.0
      %498 = vmatprep.subr.mxu0 0.0
      %499 = vmatpush1.msra.mxu0 0.0
      %500 = vmatprep.subr.mxu0 0.0
      %501 = vmatpush1.msra.mxu0 0.0
      %502 = vmatprep.subr.mxu0 0.0
      %503 = vmatpush1.msra.mxu0 0.0
      %504 = vmatprep.subr.mxu0 0.0
      %505 = vmatpush1.msra.mxu0 0.0
      %506 = vmatprep.subr.mxu0 0.0
      %507 = vmatpush1.msra.mxu0 0.0
      %508 = vmatprep.subr.mxu0 0.0
      %509 = vmatpush1.msra.mxu0 0.0
      %510 = vmatprep.subr.mxu0 0.0
      %511 = vmatpush1.msra.mxu0 0.0
      %512 = vmatprep.subr.mxu0 0.0
      %513 = vmatpush1.msra.mxu0 0.0
      %514 = vmatprep.subr.mxu0 0.0
      %515 = vmatpush1.msra.mxu0 0.0
      %516 = vmatprep.subr.mxu0 0.0
      %517 = vmatpush1.msra.mxu0 0.0
      %518 = vmatprep.mubr.f32.mxu0 0.0
      %519 = vmatmul.mubr.f32.gmra.mrb[0].mxu0 %v446
      %v520 = vpop.f32.mrb[0].mxu0
      %v521 = vadd.f32 0.0, %v520
      %v522 = vpop.f32.mrb[0].mxu0
      %v523 = vadd.f32 0.0, %v522
      %524 = vdwg.mxu0
      %525 = vst [vmem:[%s256] sm:$0xff] %v521
      %526 = vst [vmem:[%s256 + $0x8] sm:$0xff] %v523
      %v527 = vadd.f32 %v521, %v523
      %528 = vadd.xlane.f32.xlu0 %v527
      %v529 = vpop.xlane.xlu0 %528
      %vm530 = vcmask 7168
      %531 = vst.msk [vmem:[%s264] sm:$0xff] %vm530, %v529
      %v532 = vmul.f32 %v521, %v521
      %v533 = vmul.f32 %v523, %v523
      %v534 = vadd.f32 %v532, %v533
      %535 = vadd.xlane.f32.xlu0 %v534
      %v536 = vpop.xlane.xlu0 %535
      %537 = vst.msk [vmem:[%s271] sm:$0xff] %vm530, %v536
      %s538 = smul.u32 2, %s21
      %p539 = scmp.lt.s32.totalorder %s20, 1
      %s540 = scalar_select %p539, %s20, 1
      %p541 = scmp.lt.s32.totalorder %s538, 1
      %s542 = scalar_select %p541, %s538, 1
      %s543 = smul.addr %s540, 2
      %s544 = sadd.s32 %s542, %s543
      %s545 = smul.addr %s544, 8
      %s546 = scalar_lea.vmem %s2, %s545
      %p547 = scmp.lt.s32.totalorder %s20, 1
      %s548 = scalar_select %p547, %s20, 1
      %p549 = scmp.lt.s32.totalorder %s21, 0
      %s550 = scalar_select %p549, %s21, 0
      %s551 = sadd.s32 %s550, %s548
      %s552 = smul.addr %s551, 8
      %s553 = scalar_lea.vmem %s3, %s552
      %p554 = scmp.lt.s32.totalorder %s20, 1
      %s555 = scalar_select %p554, %s20, 1
      %p556 = scmp.lt.s32.totalorder %s21, 0
      %s557 = scalar_select %p556, %s21, 0
      %s558 = sadd.s32 %s557, %s555
      %s559 = smul.addr %s558, 8
      %s560 = scalar_lea.vmem %s4, %s559
      // Predicated region
      $region29: #{same_conv.2} parent=27 // pred_check
        %p561 = pneg %p97
      $region30: #{same_conv.2} parent=27 // pred_check_branch
        %563 = sbr.rel (%p561) target = $region32
      $region31: #{same_conv.2} parent=27 // pred_region
        %s564 = smul.u32 2, %s21
      $region32: #{same_conv.2} parent=27 // pred_fallthru
        _
      // Predicated region
      $region33: #{same_conv.2} parent=27 // pred_check
        %p565 = pneg %p125
      $region34: #{same_conv.2} parent=27 // pred_check_branch
        %567 = sbr.rel (%p565) target = $region36
      $region35: #{same_conv.2} parent=27 // pred_region
        _
      $region36: #{same_conv.2} parent=27 // pred_fallthru
        _
      // Predicated region
      $region37: #{same_conv.2} parent=27 // pred_check
        %p568 = pneg %p153
      $region38: #{same_conv.2} parent=27 // pred_check_branch
        %570 = sbr.rel (%p568) target = $region40
      $region39: #{same_conv.2} parent=27 // pred_region
        _
      $region40: #{same_conv.2} parent=27 // pred_fallthru
        _
    $region28: #{same_conv.2} parent=5 // pred_fallthru
      _
    %p571 = scmp.le.s32.totalorder 2, %s11
    // Predicated region
    $region41: #{same_conv.2} parent=5 // pred_check
      %p572 = pneg %p571
    $region42: #{same_conv.2} parent=5 // pred_check_branch
      %574 = sbr.rel (%p572) target = $region44
    $region43: #{same_conv.2} parent=5 // pred_region
      %s575 = ssub.s32 %s11, 2
      // Predicated region
      $region45: #{same_conv.2} parent=43 // pred_check
        %p576 = pneg %p103
      $region46: #{same_conv.2} parent=43 // pred_check_branch
        %578 = sbr.rel (%p576) target = $region48
      $region47: #{same_conv.2} parent=43 // pred_region
        %s579 = smul.u32 2, %s23
        %p580 = scmp.lt.s32.totalorder %s22, 1
        %s581 = scalar_select %p580, %s22, 1
        %p582 = scmp.lt.s32.totalorder %s579, 1
        %s583 = scalar_select %p582, %s579, 1
        %s584 = smul.addr %s581, 2
        %s585 = sadd.s32 %s583, %s584
        %s586 = smul.addr %s585, 8
        %s587 = scalar_lea.vmem %s2, %s586
      $region48: #{same_conv.2} parent=43 // pred_fallthru
        _
      // Predicated region
      $region49: #{same_conv.2} parent=43 // pred_check
        %p588 = pneg %p131
      $region50: #{same_conv.2} parent=43 // pred_check_branch
        %590 = sbr.rel (%p588) target = $region52
      $region51: #{same_conv.2} parent=43 // pred_region
        %p591 = scmp.lt.s32.totalorder %s22, 1
        %s592 = scalar_select %p591, %s22, 1
        %p593 = scmp.lt.s32.totalorder %s23, 0
        %s594 = scalar_select %p593, %s23, 0
        %s595 = sadd.s32 %s594, %s592
        %s596 = smul.addr %s595, 8
        %s597 = scalar_lea.vmem %s3, %s596
      $region52: #{same_conv.2} parent=43 // pred_fallthru
        _
      // Predicated region
      $region53: #{same_conv.2} parent=43 // pred_check
        %p598 = pneg %p159
      $region54: #{same_conv.2} parent=43 // pred_check_branch
        %600 = sbr.rel (%p598) target = $region56
      $region55: #{same_conv.2} parent=43 // pred_region
        %p601 = scmp.lt.s32.totalorder %s22, 1
        %s602 = scalar_select %p601, %s22, 1
        %p603 = scmp.lt.s32.totalorder %s23, 0
        %s604 = scalar_select %p603, %s23, 0
        %s605 = sadd.s32 %s604, %s602
        %s606 = smul.addr %s605, 8
        %s607 = scalar_lea.vmem %s4, %s606
      $region56: #{same_conv.2} parent=43 // pred_fallthru
        _
    $region44: #{same_conv.2} parent=5 // pred_fallthru
      _
  $region6: #{same_conv.2} parent=0 // loop_footer
    %s15 = sadd.s32 1, %s11
  $region7: #{same_conv.2} parent=0 // loop_footer_branch
    %10 = sbr.rel target = $region3
  $region8: #{same_conv.2} parent=0 // loop_exit
    _

</llo_original>
